<compile_context>
chip_gen: v5e
topology: v5e:2x2
jax: 0.10.0
libtpu: 0.0.40
codegen_flags: <defaults>
</compile_context>

<pallas_src>
import jax
import jax.numpy as jnp
from jax import lax
from jax.experimental import pallas as pl
from jax.experimental.pallas import tpu as pltpu


_LANE = 128
_SUBLANE = 8
# Budget for the dominant VMEM consumer, the double-buffered x tile:
#   2 (buffers) * tb * tk * 4 B <= 16 MiB  =>  tb * tk <= 2M f32 elements.
# Leaves ample headroom under the 48 MiB scoped limit on every generation
# (v5e/v6e: 128 MiB physical VMEM, v7x: 64 MiB physical VMEM per TC).
_MAX_X_TILE_ELEMS = 2 * 1024 * 1024
_VMEM_LIMIT_BYTES = 48 * 1024 * 1024


def _round_up(n, m):
    return -(-n // m) * m


def _cdiv(a, b):
    return -(-a // b)


def _rebalance(b_pad, tb):
    """Shrink tb so the batch grid steps are evenly sized (minimal padding)."""
    n_steps = _cdiv(b_pad, tb)
    return _round_up(_cdiv(b_pad, n_steps), _SUBLANE)


def _choose_tiles(batch, features):
    """Pick (tile_batch, tile_k) for the (batch, features) GEMV."""
    b_pad = _round_up(batch, _SUBLANE)
    k_pad = _round_up(features, _LANE)

    # Prefer the full feature row (single K step, no accumulation / K padding)
    # as long as a reasonably large batch tile still fits the budget.
    tb_full_k = min(1024, b_pad, (_MAX_X_TILE_ELEMS // k_pad) // _SUBLANE * _SUBLANE)
    if tb_full_k >= min(b_pad, 256):
        return _rebalance(b_pad, tb_full_k), features

    # Otherwise: big batch tile + K tiling in multiples of 128.
    tb = _rebalance(b_pad, min(1024, b_pad))
    tk = max(_LANE, (_MAX_X_TILE_ELEMS // tb) // _LANE * _LANE)
    return tb, tk


def _sqrt_lasso_fwd_kernel(x_ref, w_ref, o_ref):
    # x_ref: (TB, TK)    input tile (batch rows x feature chunk)
    # w_ref: (1,  TK)    lane-dense weight row (constant along the batch axis)
    # o_ref: (1, 1, TB)  lane-dense output row, accumulated over the K grid axis
    #
    # Contract the feature (lane) axes of (1, TK) and (TB, TK) -> (1, TB): the
    # result already has batch on the lane axis, so the store is an unmasked,
    # lane-dense vst rather than a 1/128-lane masked store.
    partial = lax.dot_general(
        w_ref[...],
        x_ref[...],
        dimension_numbers=(((1,), (1,)), ((), ())),
        preferred_element_type=jnp.float32,
        precision=lax.Precision.HIGHEST,
    )

    @pl.when(pl.program_id(1) == 0)
    def _():
        o_ref[...] = partial[None]            # first K step: write (no zero-init pass)

    @pl.when(pl.program_id(1) > 0)
    def _():
        o_ref[...] += partial[None]           # later K steps: accumulate in-place


def sqrt_lasso_forward(x, weight, *, tile_batch=None, tile_k=None,
                       vmem_limit_bytes=_VMEM_LIMIT_BYTES):
    """Linear forward y = x @ weight.T (bias-free), matching SqrtLasso.forward.

    Args:
      x:      (B, D) float32
      weight: (1, D) float32 (nn.Linear layout: (out_features, in_features))
    Returns:
      (B, 1) float32
    """
    x = jnp.asarray(x, jnp.float32)
    weight = jnp.asarray(weight, jnp.float32)
    B, D = x.shape
    assert weight.shape == (1, D)

    tb_auto, tk_auto = _choose_tiles(B, D)
    tb = tile_batch if tile_batch is not None else tb_auto
    tk = tile_k if tile_k is not None else tk_auto
    assert tb % _SUBLANE == 0, "tile_batch must be a multiple of 8"
    assert tk == D or tk % _LANE == 0, "tile_k must be D or a multiple of 128"

    b_pad = _round_up(B, tb)
    d_pad = D if tk == D else _round_up(D, tk)

    # Zero-pad so every block is full: zeros in the K padding are required for a
    # correct dot product; batch padding keeps us off Pallas' undefined
    # remainder-tile semantics (the padded rows are sliced away below).
    if (b_pad, d_pad) != (B, D):
        x = jnp.pad(x, ((0, b_pad - B), (0, d_pad - D)))
    if d_pad != D:
        weight = jnp.pad(weight, ((0, 0), (0, d_pad - D)))

    nb, nk = b_pad // tb, d_pad // tk

    out = pl.pallas_call(
        _sqrt_lasso_fwd_kernel,
        out_shape=jax.ShapeDtypeStruct((nb, 1, tb), jnp.float32),
        grid_spec=pltpu.PrefetchScalarGridSpec(
            num_scalar_prefetch=0,
            grid=(nb, nk),
            in_specs=[
                pl.BlockSpec((tb, tk), lambda i, k: (i, k)),   # batch/K-tiled input
                pl.BlockSpec((1, tk), lambda i, k: (0, k)),    # lane-dense weight row
            ],
            out_specs=pl.BlockSpec((1, 1, tb), lambda i, k: (i, 0, 0)),  # lane-dense out
        ),
        compiler_params=pltpu.CompilerParams(
            dimension_semantics=("parallel", "arbitrary"),
            vmem_limit_bytes=vmem_limit_bytes,
        ),
        cost_estimate=pl.CostEstimate(
            flops=2 * B * D,
            transcendentals=0,
            bytes_accessed=4 * (B * D + D + B),
        ),
    )(x, weight)

    # (nb, 1, tb) -> (b_pad,) -> drop padded rows -> (B, 1)
    return out.reshape(nb * tb)[:B].reshape(B, 1)


if __name__ == "__main__":
    key = jax.random.PRNGKey(0)
    k1, k2, k3, k4 = jax.random.split(key, 4)

    # 1) Small shapes consistent with the module: batch=8, input_size=32.
    batch, input_size = 8, 32
    x_small = jax.random.normal(k1, (batch, input_size), dtype=jnp.float32)
    w_small = jax.random.normal(k2, (1, input_size), dtype=jnp.float32) * 0.1

    y_small = jax.block_until_ready(sqrt_lasso_forward(x_small, w_small))
    y_small_ref = jnp.dot(x_small, w_small.T, precision=lax.Precision.HIGHEST)
    assert y_small.shape == (batch, 1)
    assert jnp.allclose(y_small, y_small_ref, atol=1e-3, rtol=1e-3)

    # 2) Modest test that exercises the real tiling path: multi-step batch grid,
    #    K accumulation, zero padding (500 % 128 != 0, 300 % 128 != 0) and the
    #    lane-dense (1, TB) output reshape.
    B2, D2 = 500, 300
    x_big = jax.random.normal(k3, (B2, D2), dtype=jnp.float32)
    w_big = jax.random.normal(k4, (1, D2), dtype=jnp.float32) * 0.1

    y_big = jax.block_until_ready(
        sqrt_lasso_forward(x_big, w_big, tile_batch=128, tile_k=128)
    )
    y_big_ref = jnp.dot(x_big, w_big.T, precision=lax.Precision.HIGHEST)
    assert y_big.shape == (B2, 1)
    assert jnp.allclose(y_big, y_big_ref, atol=1e-3, rtol=1e-3)

    # 3) Auto-tiling sanity check (full-K path with batch rebalancing).
    B3, D3 = 2048, 512
    x_auto = jax.random.normal(k3, (B3, D3), dtype=jnp.float32)
    w_auto = jax.random.normal(k4, (1, D3), dtype=jnp.float32) * 0.1
    y_auto = jax.block_until_ready(sqrt_lasso_forward(x_auto, w_auto))
    y_auto_ref = jnp.dot(x_auto, w_auto.T, precision=lax.Precision.HIGHEST)
    assert y_auto.shape == (B3, 1)
    assert jnp.allclose(y_auto, y_auto_ref, atol=1e-3, rtol=1e-3)

    print("KERNEL_OK")
</pallas_src>

<mosaic_0001>
module attributes {stable_mosaic.version = 11 : i64} {
  func.func @_sqrt_lasso_fwd_kernel(%arg0: i32, %arg1: i32, %arg2: memref<8x32xf32, #tpu.memory_space<vmem>>, %arg3: memref<1x32xf32, #tpu.memory_space<vmem>>, %arg4: memref<1x1x8xf32, #tpu.memory_space<vmem>>) attributes {dimension_semantics = [#tpu.dimension_semantics<parallel>, #tpu.dimension_semantics<arbitrary>], iteration_bounds = array<i64: 1, 1>, scalar_prefetch = 0 : i64, scratch_operands = 0 : i64, tpu.core_type = #tpu.core_type<tc>, window_params = [{transform_indices = @transform_0, window_bounds = array<i64: 8, 32>}, {transform_indices = @transform_1, window_bounds = array<i64: 1, 32>}, {transform_indices = @transform_2, window_bounds = array<i64: 1, 1, 8>}]} {
    %c0 = arith.constant 0 : index
    %c0_0 = arith.constant 0 : index
    %0 = vector.load %arg3[%c0, %c0_0] : memref<1x32xf32, #tpu.memory_space<vmem>>, vector<1x32xf32>
    %c0_1 = arith.constant 0 : index
    %c0_2 = arith.constant 0 : index
    %1 = vector.load %arg2[%c0_1, %c0_2] : memref<8x32xf32, #tpu.memory_space<vmem>>, vector<8x32xf32>
    %cst = arith.constant dense<0.000000e+00> : vector<1x8xf32>
    %2 = tpu.matmul %0, %1, %cst {dimension_numbers = #tpu.dot_dimension_numbers<[1], [1], [0], [0], [0, 0, 1, 0], [], []>, precision = #tpu.contract_precision<fp32>} : vector<1x32xf32>, vector<8x32xf32>, vector<1x8xf32> -> vector<1x8xf32>
    %c0_i32 = arith.constant 0 : i32
    %3 = arith.cmpi eq, %arg1, %c0_i32 : i32
    %4 = arith.extui %3 : i1 to i32
    %c0_i32_3 = arith.constant 0 : i32
    %5 = arith.cmpi ne, %4, %c0_i32_3 : i32
    scf.if %5 {
      %9 = vector.shape_cast %2 : vector<1x8xf32> to vector<1x1x8xf32>
      %c0_6 = arith.constant 0 : index
      %c0_7 = arith.constant 0 : index
      %c0_8 = arith.constant 0 : index
      %10 = vector.load %arg4[%c0_6, %c0_7, %c0_8] : memref<1x1x8xf32, #tpu.memory_space<vmem>>, vector<1x1x8xf32>
      tpu.vector_store %arg4[%c0_6, %c0_7, %c0_8], %9 {strides = array<i32>} : memref<1x1x8xf32, #tpu.memory_space<vmem>>, vector<1x1x8xf32>,
    } else {
    }
    %c0_i32_4 = arith.constant 0 : i32
    %6 = arith.cmpi sgt, %arg1, %c0_i32_4 : i32
    %7 = arith.extui %6 : i1 to i32
    %c0_i32_5 = arith.constant 0 : i32
    %8 = arith.cmpi ne, %7, %c0_i32_5 : i32
    scf.if %8 {
      %c0_6 = arith.constant 0 : index
      %c0_7 = arith.constant 0 : index
      %c0_8 = arith.constant 0 : index
      %9 = vector.load %arg4[%c0_6, %c0_7, %c0_8] : memref<1x1x8xf32, #tpu.memory_space<vmem>>, vector<1x1x8xf32>
      %10 = vector.shape_cast %2 : vector<1x8xf32> to vector<1x1x8xf32>
      %11 = arith.addf %9, %10 : vector<1x1x8xf32>
      %c0_9 = arith.constant 0 : index
      %c0_10 = arith.constant 0 : index
      %c0_11 = arith.constant 0 : index
      %12 = vector.load %arg4[%c0_9, %c0_10, %c0_11] : memref<1x1x8xf32, #tpu.memory_space<vmem>>, vector<1x1x8xf32>
      tpu.vector_store %arg4[%c0_9, %c0_10, %c0_11], %11 {strides = array<i32>} : memref<1x1x8xf32, #tpu.memory_space<vmem>>, vector<1x1x8xf32>,
    } else {
    }
    return
  }
  func.func @transform_0(%arg0: i32, %arg1: i32) -> (i32, i32) {
    %c0_i32 = arith.constant 0 : i32
    return %arg0, %arg1 : i32, i32
  }
  func.func @transform_1(%arg0: i32, %arg1: i32) -> (i32, i32) {
    %c0_i32 = arith.constant 0 : i32
    %c0_i32_0 = arith.constant 0 : i32
    return %c0_i32, %arg1 : i32, i32
  }
  func.func @transform_2(%arg0: i32, %arg1: i32) -> (i32, i32, i32) {
    %c0_i32 = arith.constant 0 : i32
    %c0_i32_0 = arith.constant 0 : i32
    %c0_i32_1 = arith.constant 0 : i32
    return %arg0, %c0_i32, %c0_i32_0 : i32, i32, i32
  }
}

</mosaic_0001>

<llo_original>
// kernel: tpu_custom_call.1
$region0: #{tpu_custom_call.1}
  #allocation0 [shape = 'u32[]', space=smem, size = 0x4, offset = 0x4, fixed_abs, tag = 'smem constant byte address 0x4 - core index']
  #allocation1 [shape = 'u32[72,128]{1,0:T(1,128)}', space=vmem, size = 0x9000, scoped, tag = 'internal scratch']
  %s0 = inlined_call_operand.hbm [shape: f32[8,32], index: 0, kind: input, shape index: {}]
  %s1 = inlined_call_operand.hbm [shape: f32[1,32], index: 1, kind: input, shape index: {}]
  %s2 = inlined_call_operand.hbm [shape: f32[1,1,8], index: 2, kind: output, shape index: {}]
  %s3 = sld [smem:[#allocation0]]
  $region34: #{tpu_custom_call.1} parent=0
    _
  %s5 = ssub.s32 1, %s3
  %s6 = scalar_select 0, %s5, %s3
  $region1: #{tpu_custom_call.1} parent=0
    #allocation2 [shape = 'u8[4096]{0}', space=vmem, size = 0x1000, scoped, tag = 'input window, operand 0, single buffered']
    #allocation3 [shape = 's32[1]{0}', space=sflag, size = 0x4, scoped, tag = 'scoped memory for tpu_custom_call.1']
    #allocation4 [shape = 's32[1]{0}', space=sflag, size = 0x4, scoped, tag = 'scoped memory for tpu_custom_call.1']
    #allocation5 [shape = 'u8[512]{0}', space=vmem, size = 0x400, scoped, tag = 'input window, operand 1, single buffered']
    #allocation6 [shape = 's32[1]{0}', space=sflag, size = 0x4, scoped, tag = 'scoped memory for tpu_custom_call.1']
    #allocation7 [shape = 'u8[512]{0}', space=vmem, size = 0x400, scoped, tag = 'output window, operand 0, single buffered']
    %7 = vsyncpa [#allocation3], 0
    %8 = vsyncpa [#allocation6], 0
    %9 = vsyncpa [#allocation4], 0
    // Predicated region
    $region2: #{tpu_custom_call.1} parent=1 // pred_check
      _
    $region3: #{tpu_custom_call.1} parent=1 // pred_check_branch
      %11 = sbr.rel (0) target = $region5
    $region4: #{tpu_custom_call.1} parent=1 // pred_region
      %13 = vsyncadd [#allocation3], 0
      %s15 = sshll.u32 %s0, 4
      %s16 = int_to_ptr.hbm [resolvable:$true] %s15
      %s17 = sshll.u32 [#allocation2], 4
      %s18 = int_to_ptr.vmem [resolvable:$true] %s17
      %20 = dma.hbm_to_vmem [thread:$0]  %s16, 128, %s18, [#allocation3]
    $region5: #{tpu_custom_call.1} parent=1 // pred_fallthru
      _
    // Predicated region
    $region6: #{tpu_custom_call.1} parent=1 // pred_check
      _
    $region7: #{tpu_custom_call.1} parent=1 // pred_check_branch
      %22 = sbr.rel (0) target = $region9
    $region8: #{tpu_custom_call.1} parent=1 // pred_region
      %24 = vsyncadd [#allocation6], 0
      %s26 = sshll.u32 %s1, 4
      %s27 = int_to_ptr.hbm [resolvable:$true] %s26
      %s28 = sshll.u32 [#allocation5], 4
      %s29 = int_to_ptr.vmem [resolvable:$true] %s28
      %31 = dma.hbm_to_vmem [thread:$0]  %s27, 16, %s29, [#allocation6]
    $region9: #{tpu_custom_call.1} parent=1 // pred_fallthru
      _
    // Predicated region
    $region10: #{tpu_custom_call.1} parent=1 // pred_check
      _
    $region11: #{tpu_custom_call.1} parent=1 // pred_check_branch
      %33 = sbr.rel (0) target = $region13
    $region12: #{tpu_custom_call.1} parent=1 // pred_region
      %35 = dma.done [#allocation3], 128
    $region13: #{tpu_custom_call.1} parent=1 // pred_fallthru
      _
    // Predicated region
    $region14: #{tpu_custom_call.1} parent=1 // pred_check
      _
    $region15: #{tpu_custom_call.1} parent=1 // pred_check_branch
      %37 = sbr.rel (0) target = $region17
    $region16: #{tpu_custom_call.1} parent=1 // pred_region
      %39 = dma.done [#allocation6], 16
    $region17: #{tpu_custom_call.1} parent=1 // pred_fallthru
      _
    %v40 = vld [vmem:[#allocation5] sm:$0x1]
    %v41 = vld [vmem:[#allocation2] sm:$0xff]
    %vm42 = vcmask 261120
    %v44 = vsel %vm42, %v40, 0
    %v47 = vsel %vm42, %v41, 0
    %49 = vmatpush.xpose.msra.mxu0 0.0
    %50 = vmatpush.xpose.msra.mxu0 0.0
    %51 = vmatpush.xpose.msra.mxu0 0.0
    %52 = vmatpush.xpose.msra.mxu0 0.0
    %53 = vmatpush.xpose.msra.mxu0 0.0
    %54 = vmatpush.xpose.msra.mxu0 0.0
    %55 = vmatpush.xpose.msra.mxu0 0.0
    %56 = vmatpush.xpose.msra.mxu0 0.0
    %57 = vmatpush.xpose.msra.mxu0 0.0
    %58 = vmatpush.xpose.msra.mxu0 0.0
    %59 = vmatpush.xpose.msra.mxu0 0.0
    %60 = vmatpush.xpose.msra.mxu0 0.0
    %61 = vmatpush.xpose.msra.mxu0 0.0
    %62 = vmatpush.xpose.msra.mxu0 0.0
    %63 = vmatpush.xpose.msra.mxu0 0.0
    %v64 = vand.u32 %v47, 4294901760
    %65 = vmatpush.xpose.msra.mxu0 %v64
    %v66 = vand.u32 %v44, 4294901760
    %v67 = vsub.f32 %v44, %v66
    %v68 = vand.u32 %v67, 4294901760
    %v69 = vsub.f32 %v67, %v68
    %v70 = vand.u32 %v69, 4294901760
    %71 = vmatmul.f32.gmra.mxu0 %v70
    %v72 = vpop.f32.mrf.mxu0
    %v73 = vadd.f32 0.0, %v72
    %74 = vdwg.mxu0
    %75 = vmatpush.xpose.msra.mxu0 0.0
    %76 = vmatpush.xpose.msra.mxu0 0.0
    %77 = vmatpush.xpose.msra.mxu0 0.0
    %78 = vmatpush.xpose.msra.mxu0 0.0
    %79 = vmatpush.xpose.msra.mxu0 0.0
    %80 = vmatpush.xpose.msra.mxu0 0.0
    %81 = vmatpush.xpose.msra.mxu0 0.0
    %82 = vmatpush.xpose.msra.mxu0 0.0
    %83 = vmatpush.xpose.msra.mxu0 0.0
    %84 = vmatpush.xpose.msra.mxu0 0.0
    %85 = vmatpush.xpose.msra.mxu0 0.0
    %86 = vmatpush.xpose.msra.mxu0 0.0
    %87 = vmatpush.xpose.msra.mxu0 0.0
    %88 = vmatpush.xpose.msra.mxu0 0.0
    %89 = vmatpush.xpose.msra.mxu0 0.0
    %v90 = vand.u32 %v47, 4294901760
    %v91 = vsub.f32 %v47, %v90
    %v92 = vand.u32 %v91, 4294901760
    %v93 = vsub.f32 %v91, %v92
    %v94 = vand.u32 %v93, 4294901760
    %95 = vmatpush.xpose.msra.mxu0 %v94
    %v96 = vand.u32 %v44, 4294901760
    %97 = vmatmul.f32.gmra.mxu0 %v96
    %v98 = vpop.f32.mrf.mxu0
    %v99 = vadd.f32 %v73, %v98
    %100 = vdwg.mxu0
    %101 = vmatpush.xpose.msra.mxu0 0.0
    %102 = vmatpush.xpose.msra.mxu0 0.0
    %103 = vmatpush.xpose.msra.mxu0 0.0
    %104 = vmatpush.xpose.msra.mxu0 0.0
    %105 = vmatpush.xpose.msra.mxu0 0.0
    %106 = vmatpush.xpose.msra.mxu0 0.0
    %107 = vmatpush.xpose.msra.mxu0 0.0
    %108 = vmatpush.xpose.msra.mxu0 0.0
    %109 = vmatpush.xpose.msra.mxu0 0.0
    %110 = vmatpush.xpose.msra.mxu0 0.0
    %111 = vmatpush.xpose.msra.mxu0 0.0
    %112 = vmatpush.xpose.msra.mxu0 0.0
    %113 = vmatpush.xpose.msra.mxu0 0.0
    %114 = vmatpush.xpose.msra.mxu0 0.0
    %115 = vmatpush.xpose.msra.mxu0 0.0
    %v116 = vand.u32 %v47, 4294901760
    %v117 = vsub.f32 %v47, %v116
    %118 = vmatpush.xpose.msra.mxu0 %v117
    %v119 = vand.u32 %v44, 4294901760
    %v120 = vsub.f32 %v44, %v119
    %121 = vmatmul.f32.gmra.mxu0 %v120
    %v122 = vpop.f32.mrf.mxu0
    %v123 = vadd.f32 %v99, %v122
    %124 = vdwg.mxu0
    %125 = vmatpush.xpose.msra.mxu0 0.0
    %126 = vmatpush.xpose.msra.mxu0 0.0
    %127 = vmatpush.xpose.msra.mxu0 0.0
    %128 = vmatpush.xpose.msra.mxu0 0.0
    %129 = vmatpush.xpose.msra.mxu0 0.0
    %130 = vmatpush.xpose.msra.mxu0 0.0
    %131 = vmatpush.xpose.msra.mxu0 0.0
    %132 = vmatpush.xpose.msra.mxu0 0.0
    %133 = vmatpush.xpose.msra.mxu0 0.0
    %134 = vmatpush.xpose.msra.mxu0 0.0
    %135 = vmatpush.xpose.msra.mxu0 0.0
    %136 = vmatpush.xpose.msra.mxu0 0.0
    %137 = vmatpush.xpose.msra.mxu0 0.0
    %138 = vmatpush.xpose.msra.mxu0 0.0
    %139 = vmatpush.xpose.msra.mxu0 0.0
    %v140 = vand.u32 %v47, 4294901760
    %141 = vmatpush.xpose.msra.mxu0 %v140
    %v142 = vand.u32 %v44, 4294901760
    %v143 = vsub.f32 %v44, %v142
    %v144 = vand.u32 %v143, 4294901760
    %145 = vmatmul.f32.gmra.mxu0 %v144
    %v146 = vpop.f32.mrf.mxu0
    %v147 = vadd.f32 %v123, %v146
    %148 = vdwg.mxu0
    %149 = vmatpush.xpose.msra.mxu0 0.0
    %150 = vmatpush.xpose.msra.mxu0 0.0
    %151 = vmatpush.xpose.msra.mxu0 0.0
    %152 = vmatpush.xpose.msra.mxu0 0.0
    %153 = vmatpush.xpose.msra.mxu0 0.0
    %154 = vmatpush.xpose.msra.mxu0 0.0
    %155 = vmatpush.xpose.msra.mxu0 0.0
    %156 = vmatpush.xpose.msra.mxu0 0.0
    %157 = vmatpush.xpose.msra.mxu0 0.0
    %158 = vmatpush.xpose.msra.mxu0 0.0
    %159 = vmatpush.xpose.msra.mxu0 0.0
    %160 = vmatpush.xpose.msra.mxu0 0.0
    %161 = vmatpush.xpose.msra.mxu0 0.0
    %162 = vmatpush.xpose.msra.mxu0 0.0
    %163 = vmatpush.xpose.msra.mxu0 0.0
    %v164 = vand.u32 %v47, 4294901760
    %v165 = vsub.f32 %v47, %v164
    %v166 = vand.u32 %v165, 4294901760
    %167 = vmatpush.xpose.msra.mxu0 %v166
    %v168 = vand.u32 %v44, 4294901760
    %169 = vmatmul.f32.gmra.mxu0 %v168
    %v170 = vpop.f32.mrf.mxu0
    %v171 = vadd.f32 %v147, %v170
    %172 = vdwg.mxu0
    %173 = vmatpush.xpose.msra.mxu0 0.0
    %174 = vmatpush.xpose.msra.mxu0 0.0
    %175 = vmatpush.xpose.msra.mxu0 0.0
    %176 = vmatpush.xpose.msra.mxu0 0.0
    %177 = vmatpush.xpose.msra.mxu0 0.0
    %178 = vmatpush.xpose.msra.mxu0 0.0
    %179 = vmatpush.xpose.msra.mxu0 0.0
    %180 = vmatpush.xpose.msra.mxu0 0.0
    %181 = vmatpush.xpose.msra.mxu0 0.0
    %182 = vmatpush.xpose.msra.mxu0 0.0
    %183 = vmatpush.xpose.msra.mxu0 0.0
    %184 = vmatpush.xpose.msra.mxu0 0.0
    %185 = vmatpush.xpose.msra.mxu0 0.0
    %186 = vmatpush.xpose.msra.mxu0 0.0
    %187 = vmatpush.xpose.msra.mxu0 0.0
    %v188 = vand.u32 %v47, 4294901760
    %189 = vmatpush.xpose.msra.mxu0 %v188
    %v190 = vand.u32 %v44, 4294901760
    %191 = vmatmul.f32.gmra.mxu0 %v190
    %v192 = vpop.f32.mrf.mxu0
    %v193 = vadd.f32 %v171, %v192
    %194 = vdwg.mxu0
    %p195 = scmp.eq.s32.totalorder 0, 0
    // Predicated region
    $region18: #{tpu_custom_call.1} parent=1 // pred_check
      %p196 = pneg %p195
    $region19: #{tpu_custom_call.1} parent=1 // pred_check_branch
      %198 = sbr.rel (%p196) target = $region21
    $region20: #{tpu_custom_call.1} parent=1 // pred_region
      %vm199 = vcmask 57344
      %200 = vst.msk [vmem:[#allocation7] sm:$0x1] %vm199, %v193
    $region21: #{tpu_custom_call.1} parent=1 // pred_fallthru
      _
    %p201 = scmp.gt.s32.totalorder 0, 0
    // Predicated region
    $region22: #{tpu_custom_call.1} parent=1 // pred_check
      %p202 = pneg %p201
    $region23: #{tpu_custom_call.1} parent=1 // pred_check_branch
      %204 = sbr.rel (%p202) target = $region25
    $region24: #{tpu_custom_call.1} parent=1 // pred_region
      %v205 = vld [vmem:[#allocation7] sm:$0x1]
      %v206 = vadd.f32 %v205, %v193
      %vm207 = vcmask 57344
      %208 = vst.msk [vmem:[#allocation7] sm:$0x1] %vm207, %v206
    $region25: #{tpu_custom_call.1} parent=1 // pred_fallthru
      _
    // Predicated region
    $region26: #{tpu_custom_call.1} parent=1 // pred_check
      _
    $region27: #{tpu_custom_call.1} parent=1 // pred_check_branch
      %210 = sbr.rel (0) target = $region29
    $region28: #{tpu_custom_call.1} parent=1 // pred_region
      %212 = vsyncadd [#allocation4], 0
      %s214 = sshll.u32 [#allocation7], 4
      %s215 = int_to_ptr.vmem [resolvable:$true] %s214
      %s216 = sshll.u32 %s2, 4
      %s217 = int_to_ptr.hbm [resolvable:$true] %s216
      %219 = dma.vmem_to_hbm [thread:$0]  %s215, 16, %s217, [#allocation4]
    $region29: #{tpu_custom_call.1} parent=1 // pred_fallthru
      _
    // Predicated region
    $region30: #{tpu_custom_call.1} parent=1 // pred_check
      _
    $region31: #{tpu_custom_call.1} parent=1 // pred_check_branch
      %221 = sbr.rel (0) target = $region33
    $region32: #{tpu_custom_call.1} parent=1 // pred_region
      %223 = dma.done [#allocation4], 16
    $region33: #{tpu_custom_call.1} parent=1 // pred_fallthru
      _
    %224 = vsyncpa [#allocation3], 1
    %225 = vsyncpa [#allocation6], 1
    %226 = vsyncpa [#allocation4], 1

</llo_original>
